<compile_context>
chip_gen: v6e
topology: v6e:2x2x1
jax: 0.10.0
libtpu: 0.0.40
codegen_flags: <defaults>
</compile_context>

<pallas_src>
import jax
import jax.numpy as jnp
from jax.experimental import pallas as pl
from jax.experimental.pallas import tpu as pltpu
import numpy as np


def _faloss_kernel(ti_ref, tj_ref, lhs_ref, rhs_ref, out_ref, acc_ref):
    p = pl.program_id(1)

    @pl.when(p == 0)
    def _():
        acc_ref[...] = jnp.zeros_like(acc_ref)

    # Off-diagonal tiles of the symmetric |mat2 - mat1| count twice; fold the
    # weight into the small (2C, T) RHS tile (2 vreg multiplies) instead of the
    # (T, T) result.  abs(w * d) == w * abs(d) since w > 0.
    w = jnp.where(ti_ref[p] == tj_ref[p], 1.0, 2.0).astype(jnp.float32)

    lhs = lhs_ref[...]            # (T, 2C)   [x2 | x1]
    rhs = rhs_ref[...] * w        # (2C, T)   [x2 ; -x1] * w
    d = jnp.dot(lhs, rhs, preferred_element_type=jnp.float32)  # w * (mat2 - mat1) tile

    acc_ref[...] += jnp.abs(d)    # pure VPU accumulation, no per-step XLU reduce

    @pl.when(p == pl.num_programs(1) - 1)
    def _():
        # One cross-lane reduce + one tiny store per batch (not per tile step).
        out_ref[...] = jnp.sum(acc_ref[...]).reshape(1, 1)


def _avg_pool_nchw(x, k):
    """AvgPool2d(k) with PyTorch floor semantics (crop trailing remainder)."""
    B, C, H, W = x.shape
    h, w = H // k, W // k
    x = x[:, :, : h * k, : w * k]
    return x.reshape(B, C, h, k, w, k).mean(axis=(3, 5))


def _pick_tile(n):
    for t in (512, 256, 128):
        if n % t == 0:
            return t
    return n  # small / irregular N: single full-extent tile


def fa_loss(feature1, feature2, subscale=0.0625):
    """Pallas-backed FALoss forward. feature1/feature2 are NCHW float arrays."""
    k = int(1.0 / subscale)

    p1 = _avg_pool_nchw(feature1.astype(jnp.float32), k)  # (B, C, h, w)
    p2 = _avg_pool_nchw(feature2.astype(jnp.float32), k)

    B, C, h, w = p1.shape
    N = h * w
    K2 = 2 * C

    f1n = p1.reshape(B, C, N)
    f2n = p2.reshape(B, C, N)

    # Fused signed-concat operands:  lhs @ rhs == mat2 - mat1  per batch.
    rhs = jnp.concatenate([f2n, -f1n], axis=1)                    # (B, 2C, N) K-major
    lhs = jnp.concatenate([f2n, f1n], axis=1).transpose(0, 2, 1)  # (B, N, 2C) M-major

    # Upper-triangular tile enumeration (symmetry of |mat2 - mat1|).
    T = _pick_tile(N)
    nt = N // T
    ti_list, tj_list = [], []
    for i in range(nt):
        for j in range(i, nt):
            ti_list.append(i)
            tj_list.append(j)
    ti = jnp.asarray(ti_list, dtype=jnp.int32)
    tj = jnp.asarray(tj_list, dtype=jnp.int32)
    P = int(ti.shape[0])

    grid_spec = pltpu.PrefetchScalarGridSpec(
        num_scalar_prefetch=2,
        grid=(B, P),
        in_specs=[
            pl.BlockSpec((None, T, K2), lambda b, p, ti_r, tj_r: (b, ti_r[p], 0)),
            pl.BlockSpec((None, K2, T), lambda b, p, ti_r, tj_r: (b, 0, tj_r[p])),
        ],
        out_specs=pl.BlockSpec((None, 1, 1), lambda b, p, ti_r, tj_r: (b, 0, 0)),
        scratch_shapes=[pltpu.VMEM((T, T), jnp.float32)],
    )

    partial = pl.pallas_call(
        _faloss_kernel,
        out_shape=jax.ShapeDtypeStruct((B, 1, 1), jnp.float32),
        grid_spec=grid_spec,
        compiler_params=pltpu.CompilerParams(
            dimension_semantics=("parallel", "arbitrary"),
        ),
    )(ti, tj, lhs, rhs)

    return jnp.sum(partial) / float(N) ** 2


def _fa_loss_ref(feature1, feature2, subscale=0.0625):
    """Pure-JAX reference mirroring the PyTorch forward."""
    k = int(1.0 / subscale)
    p1 = _avg_pool_nchw(feature1.astype(jnp.float32), k)
    p2 = _avg_pool_nchw(feature2.astype(jnp.float32), k)
    B, C, h, w = p1.shape
    f1 = p1.reshape(B, C, h * w)
    f2 = p2.reshape(B, C, h * w)
    mat1 = jnp.einsum("bcn,bcm->bnm", f1, f1)
    mat2 = jnp.einsum("bcn,bcm->bnm", f2, f2)
    return jnp.sum(jnp.abs(mat2 - mat1)) / float(h * w) ** 2


if __name__ == "__main__":
    key = jax.random.PRNGKey(0)
    k1, k2 = jax.random.split(key)

    # subscale=0.0625 -> AvgPool2d(16); 64x64 spatial pools to (2, 4, 4, 4), N=16.
    B, C, H, W = 2, 4, 64, 64
    feature1 = jax.random.normal(k1, (B, C, H, W), dtype=jnp.float32)
    feature2 = jax.random.normal(k2, (B, C, H, W), dtype=jnp.float32)

    out = fa_loss(feature1, feature2)
    out = jax.block_until_ready(out)

    ref = jax.block_until_ready(_fa_loss_ref(feature1, feature2))
    assert np.allclose(np.asarray(out), np.asarray(ref), rtol=1e-4, atol=1e-5), (
        out, ref)

    print("KERNEL_OK")
</pallas_src>

<mosaic_0001>
module attributes {stable_mosaic.version = 11 : i64} {
  func.func @_faloss_kernel(%arg0: i32, %arg1: i32, %arg2: memref<1xi32, #tpu.memory_space<smem>>, %arg3: memref<1xi32, #tpu.memory_space<smem>>, %arg4: memref<1x16x8xf32, #tpu.memory_space<vmem>>, %arg5: memref<1x8x16xf32, #tpu.memory_space<vmem>>, %arg6: memref<1x1x1xf32, #tpu.memory_space<vmem>>, %arg7: memref<16x16xf32, #tpu.memory_space<vmem>>) attributes {dimension_semantics = [#tpu.dimension_semantics<parallel>, #tpu.dimension_semantics<arbitrary>], iteration_bounds = array<i64: 2, 1>, scalar_prefetch = 2 : i64, scratch_operands = 1 : i64, tpu.core_type = #tpu.core_type<tc>, window_params = [{transform_indices = @transform_0, window_bounds = array<i64: 1, 16, 8>}, {transform_indices = @transform_1, window_bounds = array<i64: 1, 8, 16>}, {transform_indices = @transform_2, window_bounds = array<i64: 1, 1, 1>}]} {
    %c0_i32 = arith.constant 0 : i32
    %0 = arith.cmpi eq, %arg1, %c0_i32 : i32
    %1 = arith.extui %0 : i1 to i32
    %c0_i32_0 = arith.constant 0 : i32
    %2 = arith.cmpi ne, %1, %c0_i32_0 : i32
    scf.if %2 {
      %cst_14 = arith.constant 0.000000e+00 : f32
      %23 = vector.broadcast %cst_14 : f32 to vector<16x16xf32>
      %c0_15 = arith.constant 0 : index
      %c0_16 = arith.constant 0 : index
      %24 = vector.load %arg7[%c0_15, %c0_16] : memref<16x16xf32, #tpu.memory_space<vmem>>, vector<16x16xf32>
      tpu.vector_store %arg7[%c0_15, %c0_16], %23 {strides = array<i32>} : memref<16x16xf32, #tpu.memory_space<vmem>>, vector<16x16xf32>,
    } else {
    }
    %3 = arith.index_cast %arg1 : i32 to index
    %4 = memref.load %arg2[%3] : memref<1xi32, #tpu.memory_space<smem>>
    %5 = arith.index_cast %arg1 : i32 to index
    %6 = memref.load %arg3[%5] : memref<1xi32, #tpu.memory_space<smem>>
    %7 = arith.cmpi eq, %4, %6 : i32
    %cst = arith.constant 1.000000e+00 : f32
    %cst_1 = arith.constant 2.000000e+00 : f32
    %8 = arith.select %7, %cst, %cst_1 : f32
    %c0 = arith.constant 0 : index
    %c0_2 = arith.constant 0 : index
    %c0_3 = arith.constant 0 : index
    %9 = vector.load %arg4[%c0, %c0_2, %c0_3] : memref<1x16x8xf32, #tpu.memory_space<vmem>>, vector<1x16x8xf32>
    %10 = vector.shape_cast %9 : vector<1x16x8xf32> to vector<16x8xf32>
    %c0_4 = arith.constant 0 : index
    %c0_5 = arith.constant 0 : index
    %c0_6 = arith.constant 0 : index
    %11 = vector.load %arg5[%c0_4, %c0_5, %c0_6] : memref<1x8x16xf32, #tpu.memory_space<vmem>>, vector<1x8x16xf32>
    %12 = vector.shape_cast %11 : vector<1x8x16xf32> to vector<8x16xf32>
    %13 = vector.broadcast %8 : f32 to vector<8x16xf32>
    %14 = arith.mulf %12, %13 : vector<8x16xf32>
    %cst_7 = arith.constant dense<0.000000e+00> : vector<16x16xf32>
    %15 = tpu.matmul %10, %14, %cst_7 {dimension_numbers = #tpu.dot_dimension_numbers<[1], [0], [0], [1], [0, 0, 1, 1], [], []>} : vector<16x8xf32>, vector<8x16xf32>, vector<16x16xf32> -> vector<16x16xf32>
    %c0_8 = arith.constant 0 : index
    %c0_9 = arith.constant 0 : index
    %16 = vector.load %arg7[%c0_8, %c0_9] : memref<16x16xf32, #tpu.memory_space<vmem>>, vector<16x16xf32>
    %17 = math.absf %15 : vector<16x16xf32>
    %18 = arith.addf %16, %17 : vector<16x16xf32>
    %c0_10 = arith.constant 0 : index
    %c0_11 = arith.constant 0 : index
    %19 = vector.load %arg7[%c0_10, %c0_11] : memref<16x16xf32, #tpu.memory_space<vmem>>, vector<16x16xf32>
    tpu.vector_store %arg7[%c0_10, %c0_11], %18 {strides = array<i32>} : memref<16x16xf32, #tpu.memory_space<vmem>>, vector<16x16xf32>,
    %c0_i32_12 = arith.constant 0 : i32
    %20 = arith.cmpi eq, %arg1, %c0_i32_12 : i32
    %21 = arith.extui %20 : i1 to i32
    %c0_i32_13 = arith.constant 0 : i32
    %22 = arith.cmpi ne, %21, %c0_i32_13 : i32
    scf.if %22 {
      %c0_14 = arith.constant 0 : index
      %c0_15 = arith.constant 0 : index
      %23 = vector.load %arg7[%c0_14, %c0_15] : memref<16x16xf32, #tpu.memory_space<vmem>>, vector<16x16xf32>
      %24 = vector.shape_cast %23 : vector<16x16xf32> to vector<1x16x16xf32>
      %cst_16 = arith.constant dense<0.000000e+00> : vector<1xf32>
      %25 = vector.multi_reduction <add>, %24, %cst_16 [1, 2] : vector<1x16x16xf32> to vector<1xf32>
      %26 = vector.shape_cast %25 : vector<1xf32> to vector<1x1x1xf32>
      %27 = vector.extract %26[0, 0, 0] : f32 from vector<1x1x1xf32>
      %28 = vector.broadcast %27 : f32 to vector<1x1xf32>
      %c0_17 = arith.constant 0 : index
      %c0_18 = arith.constant 0 : index
      %c0_19 = arith.constant 0 : index
      %29 = vector.load %arg6[%c0_17, %c0_18, %c0_19] : memref<1x1x1xf32, #tpu.memory_space<vmem>>, vector<1x1x1xf32>
      %30 = vector.shape_cast %29 : vector<1x1x1xf32> to vector<1x1xf32>
      %31 = vector.shape_cast %28 : vector<1x1xf32> to vector<1x1x1xf32>
      tpu.vector_store %arg6[%c0_17, %c0_18, %c0_19], %31 {strides = array<i32>} : memref<1x1x1xf32, #tpu.memory_space<vmem>>, vector<1x1x1xf32>,
    } else {
    }
    return
  }
  func.func @transform_0(%arg0: i32, %arg1: i32, %arg2: memref<1xi32, #tpu.memory_space<smem>>, %arg3: memref<1xi32, #tpu.memory_space<smem>>) -> (i32, i32, i32) {
    %0 = arith.index_cast %arg1 : i32 to index
    %1 = memref.load %arg2[%0] : memref<1xi32, #tpu.memory_space<smem>>
    %c0_i32 = arith.constant 0 : i32
    %c0_i32_0 = arith.constant 0 : i32
    return %arg0, %1, %c0_i32 : i32, i32, i32
  }
  func.func @transform_1(%arg0: i32, %arg1: i32, %arg2: memref<1xi32, #tpu.memory_space<smem>>, %arg3: memref<1xi32, #tpu.memory_space<smem>>) -> (i32, i32, i32) {
    %0 = arith.index_cast %arg1 : i32 to index
    %1 = memref.load %arg3[%0] : memref<1xi32, #tpu.memory_space<smem>>
    %c0_i32 = arith.constant 0 : i32
    %c0_i32_0 = arith.constant 0 : i32
    return %arg0, %c0_i32, %1 : i32, i32, i32
  }
  func.func @transform_2(%arg0: i32, %arg1: i32, %arg2: memref<1xi32, #tpu.memory_space<smem>>, %arg3: memref<1xi32, #tpu.memory_space<smem>>) -> (i32, i32, i32) {
    %c0_i32 = arith.constant 0 : i32
    %c0_i32_0 = arith.constant 0 : i32
    %c0_i32_1 = arith.constant 0 : i32
    return %arg0, %c0_i32, %c0_i32_0 : i32, i32, i32
  }
}

</mosaic_0001>

<llo_original>
// kernel: tpu_custom_call.1
$region0: #{tpu_custom_call.1}
  #allocation0 [shape = 'u32[]', space=smem, size = 0x4, offset = 0x4, fixed_abs, tag = 'smem constant byte address 0x4 - core index']
  #allocation1 [shape = 'u32[144,128]{1,0:T(1,128)}', space=vmem, size = 0x12000, scoped, tag = 'internal scratch']
  #allocation2 [shape = 'f32[16,16]{1,0:T(8,128)}', space=vmem, size = 0x2000, scoped, tag = 'scratch operand']
  #allocation3 [shape = 's32[1]{0}', space=sflag, size = 0x4, scoped, tag = 'scoped memory for tpu_custom_call.1']
  #allocation4 [shape = 's32[1]{0:T(128)S(6)}', space=smem, size = 0x200, scoped, tag = 'prefetched SMEM operand 0']
  #allocation5 [shape = 's32[1]{0:T(128)S(6)}', space=smem, size = 0x200, scoped, tag = 'prefetched SMEM operand 1']
  %s0 = inlined_call_operand.<no memory space> [shape: s32[1], index: 0, kind: input, shape index: {}]
  %s1 = inlined_call_operand.<no memory space> [shape: s32[1], index: 1, kind: input, shape index: {}]
  %s2 = inlined_call_operand.vmem [shape: f32[2,16,8], index: 2, kind: input, shape index: {}]
  %s3 = inlined_call_operand.vmem [shape: f32[2,8,16], index: 3, kind: input, shape index: {}]
  %s4 = inlined_call_operand.vmem [shape: f32[2,1,1], index: 4, kind: output, shape index: {}]
  %s5 = sld [smem:[#allocation0]]
  $region49: #{tpu_custom_call.1} parent=0
    _
  %s7 = ssub.s32 1, %s5
  %s8 = scalar_select 0, %s7, %s5
  %9 = sst [smem:[#allocation4]] %s0
  %10 = sst [smem:[#allocation5]] %s1
  loop: start=0, step=1, limit=4
  $region2: #{tpu_custom_call.1} parent=0 // loop_pre_header
    _
  $region3: #{tpu_custom_call.1} parent=0 // loop_header
    %s12 = sphi 0, %s16
    %p13 = scmp.ge.s32.totalorder %s12, 4
    %s19 = sphi 0, %s31
    %s20 = sphi 0, %s27
    %s21 = sphi 0, %s19
    %s22 = sphi 0, %s20
    %s23 = sphi 0, %s21
    %s24 = sphi 0, %s22
    %s38 = sphi 0, %s40
    %s41 = sphi 0, %s38
    %s42 = sphi 0, %s41
    %s58 = sphi 0, %s42
    %s68 = sphi 0, %s70
    %s71 = sphi 0, %s68
    %s72 = sphi 0, %s71
    %s88 = sphi 0, %s72
    %s94 = sphi 0, %s96
    %s97 = sphi 0, %s94
    %s98 = sphi 0, %s97
    %s114 = sphi 0, %s98
  $region4: #{tpu_custom_call.1} parent=0 // loop_header_branch
    %15 = sbr.rel (%p13) target = $region8
  $region5: #{tpu_custom_call.1} parent=0 // loop_body
    %s17 = ssub.s32 %s12, 1
    %s18 = ssub.s32 %s12, 2
    %s25 = sadd.s32 1, %s20
    %p26 = scmp.ge.s32.totalorder %s25, 1
    %s27 = scalar_select %p26, 0, %s25
    %s28 = sadd.s32 1, %s19
    %s29 = scalar_select %p26, %s28, %s19
    %p30 = scmp.ge.s32.totalorder %s29, 2
    %s31 = scalar_select %p30, 0, %s29
    %s32 = sld [smem:[#allocation4 + %s20]]
    %s33 = sld [smem:[#allocation4 + %s27]]
    %s34 = ssub.s32 %s19, %s31
    %s35 = ssub.s32 %s32, %s33
    %s36 = sor.u32 %s34, %s35
    %p37 = scmp.eq.s32.totalorder %s36, 0
    %s39 = sadd.s32 %s38, 1
    %s40 = scalar_select %p37, %s38, %s39
    %p43 = pneg %p37
    %p44 = scmp.eq.s32.totalorder %s12, 1
    %p45 = por %p43, %p44
    %p46 = scmp.ne.s32.totalorder %s38, %s41
    %p47 = scmp.eq.s32.totalorder %s12, 0
    %p48 = por %p46, %p47
    %p49 = scmp.ne.s32.totalorder %s38, %s41
    %p50 = scmp.eq.s32.totalorder %s17, 1
    %p51 = por %p49, %p50
    %p52 = scmp.ne.s32.totalorder %s41, %s42
    %p53 = scmp.eq.s32.totalorder %s17, 0
    %p54 = por %p52, %p53
    %p55 = scmp.ne.s32.totalorder %s41, %s42
    %p56 = scmp.eq.s32.totalorder %s18, 1
    %p57 = por %p55, %p56
    %p59 = scmp.ne.s32.totalorder %s42, %s58
    %p60 = scmp.eq.s32.totalorder %s18, 0
    %p61 = por %p59, %p60
    %s62 = sld [smem:[#allocation5 + %s20]]
    %s63 = sld [smem:[#allocation5 + %s27]]
    %s64 = ssub.s32 %s19, %s31
    %s65 = ssub.s32 %s62, %s63
    %s66 = sor.u32 %s64, %s65
    %p67 = scmp.eq.s32.totalorder %s66, 0
    %s69 = sadd.s32 %s68, 1
    %s70 = scalar_select %p67, %s68, %s69
    %p73 = pneg %p67
    %p74 = scmp.eq.s32.totalorder %s12, 1
    %p75 = por %p73, %p74
    %p76 = scmp.ne.s32.totalorder %s68, %s71
    %p77 = scmp.eq.s32.totalorder %s12, 0
    %p78 = por %p76, %p77
    %p79 = scmp.ne.s32.totalorder %s68, %s71
    %p80 = scmp.eq.s32.totalorder %s17, 1
    %p81 = por %p79, %p80
    %p82 = scmp.ne.s32.totalorder %s71, %s72
    %p83 = scmp.eq.s32.totalorder %s17, 0
    %p84 = por %p82, %p83
    %p85 = scmp.ne.s32.totalorder %s71, %s72
    %p86 = scmp.eq.s32.totalorder %s18, 1
    %p87 = por %p85, %p86
    %p89 = scmp.ne.s32.totalorder %s72, %s88
    %p90 = scmp.eq.s32.totalorder %s18, 0
    %p91 = por %p89, %p90
    %s92 = ssub.s32 %s19, %s31
    %p93 = scmp.eq.s32.totalorder %s92, 0
    %s95 = sadd.s32 %s94, 1
    %s96 = scalar_select %p93, %s94, %s95
    %p99 = pneg %p93
    %p100 = scmp.eq.s32.totalorder %s12, 1
    %p101 = por %p99, %p100
    %p102 = scmp.ne.s32.totalorder %s94, %s97
    %p103 = scmp.eq.s32.totalorder %s12, 0
    %p104 = por %p102, %p103
    %p105 = scmp.ne.s32.totalorder %s94, %s97
    %p106 = scmp.eq.s32.totalorder %s17, 1
    %p107 = por %p105, %p106
    %p108 = scmp.ne.s32.totalorder %s97, %s98
    %p109 = scmp.eq.s32.totalorder %s17, 0
    %p110 = por %p108, %p109
    %p111 = scmp.ne.s32.totalorder %s97, %s98
    %p112 = scmp.eq.s32.totalorder %s18, 1
    %p113 = por %p111, %p112
    %p115 = scmp.ne.s32.totalorder %s98, %s114
    %p116 = scmp.eq.s32.totalorder %s18, 0
    %p117 = por %p115, %p116
    %p118 = scmp.le.s32.totalorder 1, %s12
    %p119 = scmp.lt.s32.totalorder %s12, 3
    %p120 = pnand %p118, %p119
    %p121 = pneg %p120
    // Predicated region
    $region9: #{tpu_custom_call.1} parent=5 // pred_check
      _
    $region10: #{tpu_custom_call.1} parent=5 // pred_check_branch
      %123 = sbr.rel (%p120) target = $region12
    $region11: #{tpu_custom_call.1} parent=5 // pred_region
      %s124 = ssub.s32 %s12, 1
    $region12: #{tpu_custom_call.1} parent=5 // pred_fallthru
      _
    %p125 = scmp.lt.s32.totalorder %s12, 2
    // Predicated region
    $region13: #{tpu_custom_call.1} parent=5 // pred_check
      %p126 = pneg %p125
    $region14: #{tpu_custom_call.1} parent=5 // pred_check_branch
      %128 = sbr.rel (%p126) target = $region16
    $region15: #{tpu_custom_call.1} parent=5 // pred_region
      // Predicated region
      $region17: #{tpu_custom_call.1} parent=15 // pred_check
        %p129 = pneg %p48
      $region18: #{tpu_custom_call.1} parent=15 // pred_check_branch
        %131 = sbr.rel (%p129) target = $region20
      $region19: #{tpu_custom_call.1} parent=15 // pred_region
        %s132 = sld [smem:[#allocation4 + %s20]]
        %s133 = smul.u32 2, %s132
        %p134 = scmp.lt.s32.totalorder %s19, 1
        %s135 = scalar_select %p134, %s19, 1
        %p136 = scmp.lt.s32.totalorder %s133, 1
        %s137 = scalar_select %p136, %s133, 1
        %s138 = smul.addr %s135, 2
        %s139 = sadd.s32 %s137, %s138
        %s140 = smul.addr %s139, 8
        %s141 = scalar_lea.vmem %s2, %s140
        %s142 = sld [smem:[#allocation4 + %s20]]
        %s143 = smul.u32 2, %s142
      $region20: #{tpu_custom_call.1} parent=15 // pred_fallthru
        _
      // Predicated region
      $region21: #{tpu_custom_call.1} parent=15 // pred_check
        %p144 = pneg %p78
      $region22: #{tpu_custom_call.1} parent=15 // pred_check_branch
        %146 = sbr.rel (%p144) target = $region24
      $region23: #{tpu_custom_call.1} parent=15 // pred_region
        %s147 = sld [smem:[#allocation5 + %s20]]
        %p148 = scmp.lt.s32.totalorder %s19, 1
        %s149 = scalar_select %p148, %s19, 1
        %p150 = scmp.lt.s32.totalorder %s147, 0
        %s151 = scalar_select %p150, %s147, 0
        %s152 = sadd.s32 %s151, %s149
        %s153 = smul.addr %s152, 8
        %s154 = scalar_lea.vmem %s3, %s153
        %s155 = sld [smem:[#allocation5 + %s20]]
      $region24: #{tpu_custom_call.1} parent=15 // pred_fallthru
        _
    $region16: #{tpu_custom_call.1} parent=5 // pred_fallthru
      _
    %p156 = scmp.le.s32.totalorder 1, %s12
    %p157 = scmp.lt.s32.totalorder %s12, 3
    %p158 = pnand %p156, %p157
    %p159 = pneg %p158
    // Predicated region
    $region25: #{tpu_custom_call.1} parent=5 // pred_check
      _
    $region26: #{tpu_custom_call.1} parent=5 // pred_check_branch
      %161 = sbr.rel (%p158) target = $region28
    $region27: #{tpu_custom_call.1} parent=5 // pred_region
      %s162 = ssub.s32 %s12, 1
      %s163 = sld [smem:[#allocation4 + %s22]]
      %s164 = smul.u32 2, %s163
      %p165 = scmp.lt.s32.totalorder %s21, 1
      %s166 = scalar_select %p165, %s21, 1
      %p167 = scmp.lt.s32.totalorder %s164, 1
      %s168 = scalar_select %p167, %s164, 1
      %s169 = smul.addr %s166, 2
      %s170 = sadd.s32 %s168, %s169
      %s171 = smul.addr %s170, 8
      %s172 = scalar_lea.vmem %s2, %s171
      %p173 = pneg %p54
      %p174 = pneg %p51
      %s175 = sld [smem:[#allocation5 + %s22]]
      %p176 = scmp.lt.s32.totalorder %s21, 1
      %s177 = scalar_select %p176, %s21, 1
      %p178 = scmp.lt.s32.totalorder %s175, 0
      %s179 = scalar_select %p178, %s175, 0
      %s180 = sadd.s32 %s179, %s177
      %s181 = smul.addr %s180, 8
      %s182 = scalar_lea.vmem %s3, %s181
      %p183 = pneg %p84
      %p184 = pneg %p81
      %p185 = pneg %p110
      %p186 = pneg %p107
      %p187 = scmp.lt.s32.totalorder %s21, 1
      %s188 = scalar_select %p187, %s21, 1
      %s189 = scalar_lea.vmem %s4, %s188
      %s190 = sld [smem:[#allocation4 + %s22]]
      %s191 = smul.u32 2, %s190
      %p192 = scmp.lt.s32.totalorder %s21, 1
      %s193 = scalar_select %p192, %s21, 1
      %p194 = scmp.lt.s32.totalorder %s191, 1
      %s195 = scalar_select %p194, %s191, 1
      %s196 = smul.addr %s193, 2
      %s197 = sadd.s32 %s195, %s196
      %s198 = smul.addr %s197, 8
      %s199 = scalar_lea.vmem %s2, %s198
      %s200 = sld [smem:[#allocation4 + %s22]]
      %s201 = smul.u32 2, %s200
      %s202 = sld [smem:[#allocation5 + %s22]]
      %p203 = scmp.lt.s32.totalorder %s21, 1
      %s204 = scalar_select %p203, %s21, 1
      %p205 = scmp.lt.s32.totalorder %s202, 0
      %s206 = scalar_select %p205, %s202, 0
      %s207 = sadd.s32 %s206, %s204
      %s208 = smul.addr %s207, 8
      %s209 = scalar_lea.vmem %s3, %s208
      %s210 = sld [smem:[#allocation5 + %s22]]
      %p211 = scmp.lt.s32.totalorder %s21, 1
      %s212 = scalar_select %p211, %s21, 1
      %s213 = scalar_lea.vmem %s4, %s212
      %p214 = scmp.eq.s32.totalorder %s22, 0
      // Predicated region
      $region29: #{tpu_custom_call.1} parent=27 // pred_check
        %p215 = pneg %p214
      $region30: #{tpu_custom_call.1} parent=27 // pred_check_branch
        %217 = sbr.rel (%p215) target = $region32
      $region31: #{tpu_custom_call.1} parent=27 // pred_region
        %vm218 = vcmask 130048
        %219 = vst.msk [vmem:[#allocation2] sm:$0xff] %vm218, 0.0
        %220 = vst.msk [vmem:[#allocation2 + $0x8] sm:$0xff] %vm218, 0.0
      $region32: #{tpu_custom_call.1} parent=27 // pred_fallthru
        _
      %s221 = sld [smem:[#allocation4 + %s22]]
      %s222 = sld [smem:[#allocation5 + %s22]]
      %p223 = scmp.eq.s32.totalorder %s221, %s222
      %s224 = scalar_select %p223, 1.0, 2.0
      %v225 = vld [vmem:[%s199] sm:$0xff]
      %v226 = vld [vmem:[%s199 + $0x8] sm:$0xff]
      %v227 = vld [vmem:[%s209] sm:$0xff]
      %v228 = vstv %s224
      %v229 = vmul.f32 %v227, %v228
      %vm230 = vcmask 64512
      %v232 = vsel %vm230, %v225, 0
      %v235 = vsel %vm230, %v226, 0
      %237 = vmatprep.subr.mxu0 0.0
      %238 = vmatpush1.msra.mxu0 0.0
      %239 = vmatprep.subr.mxu0 0.0
      %240 = vmatpush1.msra.mxu0 0.0
      %241 = vmatprep.subr.mxu0 0.0
      %242 = vmatpush1.msra.mxu0 0.0
      %243 = vmatprep.subr.mxu0 0.0
      %244 = vmatpush1.msra.mxu0 0.0
      %245 = vmatprep.subr.mxu0 0.0
      %246 = vmatpush1.msra.mxu0 0.0
      %247 = vmatprep.subr.mxu0 0.0
      %248 = vmatpush1.msra.mxu0 0.0
      %249 = vmatprep.subr.mxu0 0.0
      %250 = vmatpush1.msra.mxu0 0.0
      %251 = vmatprep.subr.mxu0 0.0
      %252 = vmatpush1.msra.mxu0 0.0
      %253 = vmatprep.subr.mxu0 0.0
      %254 = vmatpush1.msra.mxu0 0.0
      %255 = vmatprep.subr.mxu0 0.0
      %256 = vmatpush1.msra.mxu0 0.0
      %257 = vmatprep.subr.mxu0 0.0
      %258 = vmatpush1.msra.mxu0 0.0
      %259 = vmatprep.subr.mxu0 0.0
      %260 = vmatpush1.msra.mxu0 0.0
      %261 = vmatprep.subr.mxu0 0.0
      %262 = vmatpush1.msra.mxu0 0.0
      %263 = vmatprep.subr.mxu0 0.0
      %264 = vmatpush1.msra.mxu0 0.0
      %265 = vmatprep.subr.mxu0 0.0
      %266 = vmatpush1.msra.mxu0 0.0
      %267 = vmatprep.subr.mxu0 0.0
      %268 = vmatpush1.msra.mxu0 %v229
      %269 = vmatprep.subr.mxu0 0.0
      %270 = vmatpush2.msra.mxu0 0.0
      %271 = vmatprep.subr.mxu0 0.0
      %272 = vmatpush2.msra.mxu0 0.0
      %273 = vmatprep.subr.mxu0 0.0
      %274 = vmatpush2.msra.mxu0 0.0
      %275 = vmatprep.subr.mxu0 0.0
      %276 = vmatpush2.msra.mxu0 0.0
      %277 = vmatprep.subr.mxu0 0.0
      %278 = vmatpush2.msra.mxu0 0.0
      %279 = vmatprep.subr.mxu0 0.0
      %280 = vmatpush2.msra.mxu0 0.0
      %281 = vmatprep.subr.mxu0 0.0
      %282 = vmatpush2.msra.mxu0 0.0
      %283 = vmatprep.subr.mxu0 0.0
      %284 = vmatpush2.msra.mxu0 0.0
      %285 = vmatprep.subr.mxu0 0.0
      %286 = vmatpush2.msra.mxu0 0.0
      %287 = vmatprep.subr.mxu0 0.0
      %288 = vmatpush2.msra.mxu0 0.0
      %289 = vmatprep.subr.mxu0 0.0
      %290 = vmatpush2.msra.mxu0 0.0
      %291 = vmatprep.subr.mxu0 0.0
      %292 = vmatpush2.msra.mxu0 0.0
      %293 = vmatprep.subr.mxu0 0.0
      %294 = vmatpush2.msra.mxu0 0.0
      %295 = vmatprep.subr.mxu0 0.0
      %296 = vmatpush2.msra.mxu0 0.0
      %297 = vmatprep.subr.mxu0 0.0
      %298 = vmatpush2.msra.mxu0 0.0
      %299 = vmatprep.subr.mxu0 0.0
      %300 = vmatpush2.msra.mxu0 0.0
      %301 = vmatprep.mubr.f32.mxu0 0.0
      %302 = vmatmul.mubr.f32.gmra.mxu0 %v232
      %v303 = vpop.f32.mrf.mxu0
      %v304 = vadd.f32 0.0, %v303
      %v305 = vpop.f32.mrf.mxu0
      %306 = vmatprep.mubr.f32.mxu0 0.0
      %307 = vmatmul.mubr.f32.gmra.mxu0 %v235
      %v308 = vpop.f32.mrf.mxu0
      %v309 = vadd.f32 0.0, %v308
      %v310 = vpop.f32.mrf.mxu0
      %311 = vdwg.mxu0
      %v312 = vld [vmem:[#allocation2] sm:$0xff]
      %v313 = vld [vmem:[#allocation2 + $0x8] sm:$0xff]
      %v314 = vand.u32 2147483647, %v304
      %v315 = vand.u32 2147483647, %v309
      %v316 = vadd.f32 %v312, %v314
      %v317 = vadd.f32 %v313, %v315
      %vm318 = vcmask 130048
      %319 = vst.msk [vmem:[#allocation2] sm:$0xff] %vm318, %v316
      %320 = vst.msk [vmem:[#allocation2 + $0x8] sm:$0xff] %vm318, %v317
      // Predicated region
      $region33: #{tpu_custom_call.1} parent=27 // pred_check
        %p321 = pneg %p214
      $region34: #{tpu_custom_call.1} parent=27 // pred_check_branch
        %323 = sbr.rel (%p321) target = $region36
      $region35: #{tpu_custom_call.1} parent=27 // pred_region
        %v324 = vld [vmem:[#allocation2] sm:$0xff]
        %v325 = vld [vmem:[#allocation2 + $0x8] sm:$0xff]
        %v326 = vsel %vm318, %v324, 0.0
        %v327 = vsel %vm318, %v325, 0.0
        %v328 = vadd.f32 %v326, %v327
        %329 = vadd.xlane.f32.xlu0 %v328
        %v330 = vpop.xlane.xlu0 %329
        %v331 = vrot.slane %v330, 4
        %v332 = vadd.f32 %v330, %v331
        %v333 = vrot.slane %v332, 2
        %v334 = vadd.f32 %v332, %v333
        %v335 = vrot.slane %v334, 1
        %v336 = vadd.f32 %v334, %v335
        %s337 = vtos %v336
        %v338 = vstv %s337
        %vm339 = vcmask 0
        %340 = vst.msk [vmem:[%s213] sm:$0x1] %vm339, %v338
      $region36: #{tpu_custom_call.1} parent=27 // pred_fallthru
        _
      %p341 = scmp.lt.s32.totalorder %s21, 1
      %s342 = scalar_select %p341, %s21, 1
      %s343 = scalar_lea.vmem %s4, %s342
      // Predicated region
      $region37: #{tpu_custom_call.1} parent=27 // pred_check
        %p344 = pneg %p107
      $region38: #{tpu_custom_call.1} parent=27 // pred_check_branch
        %346 = sbr.rel (%p344) target = $region40
      $region39: #{tpu_custom_call.1} parent=27 // pred_region
        _
      $region40: #{tpu_custom_call.1} parent=27 // pred_fallthru
        _
    $region28: #{tpu_custom_call.1} parent=5 // pred_fallthru
      _
    %p347 = scmp.le.s32.totalorder 2, %s12
    // Predicated region
    $region41: #{tpu_custom_call.1} parent=5 // pred_check
      %p348 = pneg %p347
    $region42: #{tpu_custom_call.1} parent=5 // pred_check_branch
      %350 = sbr.rel (%p348) target = $region44
    $region43: #{tpu_custom_call.1} parent=5 // pred_region
      %s351 = ssub.s32 %s12, 2
      // Predicated region
      $region45: #{tpu_custom_call.1} parent=43 // pred_check
        %p352 = pneg %p113
      $region46: #{tpu_custom_call.1} parent=43 // pred_check_branch
        %354 = sbr.rel (%p352) target = $region48
      $region47: #{tpu_custom_call.1} parent=43 // pred_region
        %p355 = scmp.lt.s32.totalorder %s23, 1
        %s356 = scalar_select %p355, %s23, 1
        %s357 = scalar_lea.vmem %s4, %s356
      $region48: #{tpu_custom_call.1} parent=43 // pred_fallthru
        _
    $region44: #{tpu_custom_call.1} parent=5 // pred_fallthru
      _
  $region6: #{tpu_custom_call.1} parent=0 // loop_footer
    %s16 = sadd.s32 1, %s12
  $region7: #{tpu_custom_call.1} parent=0 // loop_footer_branch
    %11 = sbr.rel target = $region3
  $region8: #{tpu_custom_call.1} parent=0 // loop_exit
    _

</llo_original>
